<compile_context>
chip_gen: v5e
topology: v5e:2x2
jax: 0.10.0
libtpu: 0.0.40
codegen_flags: <defaults>
</compile_context>

<pallas_src>
import jax
import jax.numpy as jnp
import numpy as np
from jax.experimental import pallas as pl
from jax.experimental.pallas import tpu as pltpu

EXPANSION = 4
BN_EPS = 1e-5
PADL = 8  # left-pad block for the stride>1 scratch so the interior store is sublane-aligned


def _make_kernel(BN, L, L_out, cin, planes, cout, stride, has_shortcut, mm_dtype):
    def kernel(*refs):
        (x_ref, s1_ref, b1_ref, w1_ref, b2_ref, w2_ref, b3_ref, w3_ref) = refs[:8]
        refs = refs[8:]
        if has_shortcut:
            ws_ref, refs = refs[0], refs[1:]
        else:
            ws_ref = None
        out_ref = refs[0]
        h2p_ref = refs[1] if stride > 1 else None

        M_in = BN * L
        M_out = BN * L_out

        x = x_ref[...]                                       # (BN, L, Cin) f32
        s1 = s1_ref[...]                                     # (1, Cin)
        b1 = b1_ref[...]

        # ---- bn1 (folded scale/shift) + relu ----
        h = jnp.maximum(x * s1 + b1, 0.0)                    # (BN, L, Cin)
        hm = h.reshape(M_in, cin).astype(mm_dtype)

        # ---- conv1 (1x1; bn2 scale folded into w1) + bias + relu ----
        o1 = jnp.dot(hm, w1_ref[...], preferred_element_type=jnp.float32)   # (M_in, P)
        h2 = jnp.maximum(o1 + b2_ref[...], 0.0)              # (M_in, P) f32

        # ---- conv2: kernel=3, padding=1, stride; bn3 scale folded into w2 ----
        if stride == 1:
            # In-register taps via XLU roll; mask zeroes the per-sample boundary
            # rows, which is both the conv zero padding and the cross-sample fence.
            jrow = jax.lax.broadcasted_iota(jnp.int32, (BN, L, planes), 1)
            jrow = jrow.reshape(M_in, planes)
            tap0 = jnp.where(jrow == 0, 0.0, pltpu.roll(h2, 1, axis=0))
            tap1 = h2
            tap2 = jnp.where(jrow == L - 1, 0.0, pltpu.roll(h2, M_in - 1, axis=0))
            taps = (tap0, tap1, tap2)
        else:
            zero_row = jnp.zeros((BN, 1, planes), jnp.float32)
            h2p_ref[:, pl.ds(PADL - 1, 1), :] = zero_row                   # left conv pad
            h2p_ref[:, pl.ds(PADL + L, 1), :] = zero_row                   # right conv pad
            h2p_ref[:, pl.ds(PADL, L), :] = h2.reshape(BN, L, planes)      # aligned interior store
            taps = tuple(
                h2p_ref[:, pl.ds(PADL - 1 + k, L_out, stride), :].reshape(M_out, planes)
                for k in range(3))

        # Three accumulating dots into one f32 accumulator (no im2col concat).
        o2 = jnp.zeros((M_out, planes), jnp.float32)
        for k in range(3):
            o2 = o2 + jnp.dot(taps[k].astype(mm_dtype), w2_ref[k],
                              preferred_element_type=jnp.float32)
        h3 = jnp.maximum(o2 + b3_ref[...], 0.0)              # (M_out, P)

        # ---- conv3 (1x1) ----
        o3 = jnp.dot(h3.astype(mm_dtype), w3_ref[...],
                     preferred_element_type=jnp.float32)     # (M_out, 4P)

        # ---- shortcut ----
        if has_shortcut:
            if stride > 1:
                x_s = x_ref[:, pl.ds(0, L_out, stride), :]   # strided rows within each sample
                h_s = jnp.maximum(x_s * s1 + b1, 0.0)        # recompute bn1+relu on subset
                h_sm = h_s.reshape(M_out, cin).astype(mm_dtype)
            else:
                h_sm = hm
            sc = jnp.dot(h_sm, ws_ref[...], preferred_element_type=jnp.float32)
        else:
            sc = x.reshape(M_out, cout)                      # identity: Cin == 4P, L_out == L

        out_ref[...] = (o3 + sc).reshape(BN, L_out, cout).astype(out_ref.dtype)

    return kernel


def _vmem_and_rows():
    """Per-generation scoped-VMEM limit and target matmul rows per tile."""
    try:
        kind = jax.devices()[0].device_kind.lower()
    except Exception:
        kind = ""
    if "v7" in kind:                       # 64 MiB physical VMEM per TensorCore
        return 48 * 1024 * 1024, 512
    return 64 * 1024 * 1024, 1024          # v5e / v6e: 128 MiB physical VMEM


def _fold_bn(p):
    g, b, m, v = p
    s = g / jnp.sqrt(v + BN_EPS)
    return s.astype(jnp.float32), (b - m * s).astype(jnp.float32)


def preact_bottleneck_pallas(x_ncl, params, stride=1, *,
                             matmul_dtype=jnp.bfloat16, tile_batch=None):
    """x_ncl: (N, C_in, L) float32, PyTorch Conv1d layout."""
    N, in_planes, L = x_ncl.shape
    planes = params['conv1_w'].shape[0]
    out_planes = EXPANSION * planes
    has_shortcut = (stride != 1) or (in_planes != out_planes)
    L_out = (L + 2 - 3) // stride + 1

    vmem_limit, target_rows = _vmem_and_rows()
    if tile_batch is None:
        tile_batch = max(1, min(N, target_rows // max(L, 1)))
    BN = int(tile_batch)
    num_tiles = -(-N // BN)
    N_pad = num_tiles * BN

    # ---- fold BN (eval mode) into scales/shifts and downstream weights ----
    s1, b1 = _fold_bn(params['bn1'])
    s2, b2 = _fold_bn(params['bn2'])
    s3, b3 = _fold_bn(params['bn3'])
    w1 = (jnp.transpose(params['conv1_w'][:, :, 0]) * s2[None, :]).astype(matmul_dtype)          # (Cin, P)
    w2 = (jnp.transpose(params['conv2_w'], (2, 1, 0)) * s3[None, None, :]).astype(matmul_dtype)  # (3, P, P)
    w3 = jnp.transpose(params['conv3_w'][:, :, 0]).astype(matmul_dtype)                          # (P, 4P)

    # TODO(synk): keep the surrounding network in NLC so this transpose (and the
    # weight folding above) is done once per model instead of per block call.
    x_nlc = jnp.transpose(x_ncl, (0, 2, 1)).astype(jnp.float32)
    if N_pad != N:
        x_nlc = jnp.concatenate(
            [x_nlc, jnp.zeros((N_pad - N, L, in_planes), jnp.float32)], axis=0)

    operands = [x_nlc, s1[None, :], b1[None, :], w1, b2[None, :], w2, b3[None, :], w3]
    if has_shortcut:
        operands.append(jnp.transpose(params['shortcut_w'][:, :, 0]).astype(matmul_dtype))       # (Cin, 4P)

    const2 = lambda i: (0, 0)
    const3 = lambda i: (0, 0, 0)
    in_specs = [
        pl.BlockSpec((BN, L, in_planes), lambda i: (i, 0, 0)),   # x tile (double-buffered)
        pl.BlockSpec((1, in_planes), const2),                    # s1 (resident)
        pl.BlockSpec((1, in_planes), const2),                    # b1
        pl.BlockSpec((in_planes, planes), const2),               # w1 (bf16, resident)
        pl.BlockSpec((1, planes), const2),                       # b2
        pl.BlockSpec((3, planes, planes), const3),               # w2 (bf16, resident)
        pl.BlockSpec((1, planes), const2),                       # b3
        pl.BlockSpec((planes, out_planes), const2),              # w3 (bf16, resident)
    ]
    if has_shortcut:
        in_specs.append(pl.BlockSpec((in_planes, out_planes), const2))   # ws (bf16, resident)

    scratch_shapes = []
    if stride > 1:
        scratch_shapes.append(pltpu.VMEM((BN, L + 2 * PADL, planes), jnp.float32))

    kernel = _make_kernel(BN, L, L_out, in_planes, planes, out_planes,
                          stride, has_shortcut, matmul_dtype)

    out_nlc = pl.pallas_call(
        kernel,
        out_shape=jax.ShapeDtypeStruct((N_pad, L_out, out_planes), jnp.float32),
        grid_spec=pltpu.PrefetchScalarGridSpec(
            num_scalar_prefetch=0,
            grid=(num_tiles,),
            in_specs=in_specs,
            out_specs=pl.BlockSpec((BN, L_out, out_planes), lambda i: (i, 0, 0)),
            scratch_shapes=scratch_shapes),
        compiler_params=pltpu.CompilerParams(
            dimension_semantics=("parallel",),     # shard batch tiles across TCs (v7x megacore)
            vmem_limit_bytes=vmem_limit),
    )(*operands)

    if N_pad != N:
        out_nlc = out_nlc[:N]
    return jnp.transpose(out_nlc, (0, 2, 1))   # back to NCL


# ---------------- pure-JAX reference (eval-mode BN) ----------------
def preact_bottleneck_ref(x, params, stride=1):
    def bn(y, p):
        g, b, m, v = p
        s = g / jnp.sqrt(v + BN_EPS)
        return y * s[None, :, None] + (b - m * s)[None, :, None]

    def conv1d(y, w, stride=1, pad=0):
        return jax.lax.conv_general_dilated(
            y, w, (stride,), [(pad, pad)], dimension_numbers=('NCH', 'OIH', 'NCH'))

    in_planes = x.shape[1]
    out_planes = EXPANSION * params['conv1_w'].shape[0]
    has_shortcut = (stride != 1) or (in_planes != out_planes)
    out = jax.nn.relu(bn(x, params['bn1']))
    shortcut = conv1d(out, params['shortcut_w'], stride=stride) if has_shortcut else x
    out = conv1d(out, params['conv1_w'])
    out = conv1d(jax.nn.relu(bn(out, params['bn2'])), params['conv2_w'], stride=stride, pad=1)
    out = conv1d(jax.nn.relu(bn(out, params['bn3'])), params['conv3_w'])
    return out + shortcut


def init_params(key, in_planes, planes, stride):
    out_planes = EXPANSION * planes
    keys = jax.random.split(key, 8)

    def bn_params(k, c):
        k1, k2, k3, k4 = jax.random.split(k, 4)
        return (1.0 + 0.1 * jax.random.normal(k1, (c,)),
                0.1 * jax.random.normal(k2, (c,)),
                0.1 * jax.random.normal(k3, (c,)),
                jax.random.uniform(k4, (c,), minval=0.5, maxval=1.5))

    params = {
        'bn1': bn_params(keys[0], in_planes),
        'conv1_w': 0.2 * jax.random.normal(keys[1], (planes, in_planes, 1)),
        'bn2': bn_params(keys[2], planes),
        'conv2_w': 0.2 * jax.random.normal(keys[3], (planes, planes, 3)),
        'bn3': bn_params(keys[4], planes),
        'conv3_w': 0.2 * jax.random.normal(keys[5], (out_planes, planes, 1)),
    }
    if stride != 1 or in_planes != out_planes:
        params['shortcut_w'] = 0.2 * jax.random.normal(keys[6], (out_planes, in_planes, 1))
    return params


if __name__ == "__main__":
    key = jax.random.PRNGKey(0)

    def check(x, params, stride, tile_batch, matmul_dtype, rtol, atol):
        out = jax.block_until_ready(
            preact_bottleneck_pallas(x, params, stride=stride,
                                     matmul_dtype=matmul_dtype,
                                     tile_batch=tile_batch))
        ref = preact_bottleneck_ref(x, params, stride=stride)
        np.testing.assert_allclose(np.asarray(out), np.asarray(ref), rtol=rtol, atol=atol)

    # Case 1: projection shortcut, stride=2 (scratch conv2 path), grid of 2 batch tiles.
    k1, k2, key = jax.random.split(key, 3)
    x1 = jax.random.normal(k1, (2, 8, 16), dtype=jnp.float32)
    p1 = init_params(k2, 8, 8, 2)
    check(x1, p1, 2, 1, jnp.float32, 1e-4, 1e-4)       # exact-math path, tight tolerance
    check(x1, p1, 2, 1, jnp.bfloat16, 5e-2, 5e-2)      # bf16 MXU path, loose tolerance

    # Case 2: identity shortcut, stride=1 (roll conv2 path), batch padding (N=3, BN=2).
    k3, k4, key = jax.random.split(key, 3)
    x2 = jax.random.normal(k3, (3, 32, 16), dtype=jnp.float32)
    p2 = init_params(k4, 32, 8, 1)
    check(x2, p2, 1, 2, jnp.float32, 1e-4, 1e-4)
    check(x2, p2, 1, 2, jnp.bfloat16, 5e-2, 5e-2)

    # Case 3: projection shortcut with stride=1 (channel expansion only), default tiling.
    k5, k6, key = jax.random.split(key, 3)
    x3 = jax.random.normal(k5, (2, 8, 16), dtype=jnp.float32)
    p3 = init_params(k6, 8, 8, 1)
    check(x3, p3, 1, None, jnp.float32, 1e-4, 1e-4)
    check(x3, p3, 1, None, jnp.bfloat16, 5e-2, 5e-2)

    print("KERNEL_OK")
</pallas_src>

<mosaic_0001>
module attributes {stable_mosaic.version = 11 : i64} {
  func.func @kernel(%arg0: i32, %arg1: memref<1x16x8xf32, #tpu.memory_space<vmem>>, %arg2: memref<1x8xf32, #tpu.memory_space<vmem>>, %arg3: memref<1x8xf32, #tpu.memory_space<vmem>>, %arg4: memref<8x8xf32, #tpu.memory_space<vmem>>, %arg5: memref<1x8xf32, #tpu.memory_space<vmem>>, %arg6: memref<3x8x8xf32, #tpu.memory_space<vmem>>, %arg7: memref<1x8xf32, #tpu.memory_space<vmem>>, %arg8: memref<8x32xf32, #tpu.memory_space<vmem>>, %arg9: memref<8x32xf32, #tpu.memory_space<vmem>>, %arg10: memref<1x8x32xf32, #tpu.memory_space<vmem>>, %arg11: memref<1x32x8xf32, #tpu.memory_space<vmem>>) attributes {dimension_semantics = [#tpu.dimension_semantics<parallel>], iteration_bounds = array<i64: 2>, scalar_prefetch = 0 : i64, scratch_operands = 1 : i64, tpu.core_type = #tpu.core_type<tc>, window_params = [{transform_indices = @transform_0, window_bounds = array<i64: 1, 16, 8>}, {pipeline_mode = #tpu.pipeline_mode<synchronous>, transform_indices = @transform_1, window_bounds = array<i64: 1, 8>}, {pipeline_mode = #tpu.pipeline_mode<synchronous>, transform_indices = @transform_2, window_bounds = array<i64: 1, 8>}, {pipeline_mode = #tpu.pipeline_mode<synchronous>, transform_indices = @transform_3, window_bounds = array<i64: 8, 8>}, {pipeline_mode = #tpu.pipeline_mode<synchronous>, transform_indices = @transform_4, window_bounds = array<i64: 1, 8>}, {pipeline_mode = #tpu.pipeline_mode<synchronous>, transform_indices = @transform_5, window_bounds = array<i64: 3, 8, 8>}, {pipeline_mode = #tpu.pipeline_mode<synchronous>, transform_indices = @transform_6, window_bounds = array<i64: 1, 8>}, {pipeline_mode = #tpu.pipeline_mode<synchronous>, transform_indices = @transform_7, window_bounds = array<i64: 8, 32>}, {pipeline_mode = #tpu.pipeline_mode<synchronous>, transform_indices = @transform_8, window_bounds = array<i64: 8, 32>}, {transform_indices = @transform_9, window_bounds = array<i64: 1, 8, 32>}]} {
    %c0 = arith.constant 0 : index
    %c0_0 = arith.constant 0 : index
    %c0_1 = arith.constant 0 : index
    %0 = vector.load %arg1[%c0, %c0_0, %c0_1] : memref<1x16x8xf32, #tpu.memory_space<vmem>>, vector<1x16x8xf32>
    %c0_2 = arith.constant 0 : index
    %c0_3 = arith.constant 0 : index
    %1 = vector.load %arg2[%c0_2, %c0_3] : memref<1x8xf32, #tpu.memory_space<vmem>>, vector<1x8xf32>
    %c0_4 = arith.constant 0 : index
    %c0_5 = arith.constant 0 : index
    %2 = vector.load %arg3[%c0_4, %c0_5] : memref<1x8xf32, #tpu.memory_space<vmem>>, vector<1x8xf32>
    %3 = vector.shape_cast %1 : vector<1x8xf32> to vector<1x1x8xf32>
    %4 = vector.broadcast %3 : vector<1x1x8xf32> to vector<1x16x8xf32>
    %5 = arith.mulf %0, %4 : vector<1x16x8xf32>
    %6 = vector.shape_cast %2 : vector<1x8xf32> to vector<1x1x8xf32>
    %7 = vector.broadcast %6 : vector<1x1x8xf32> to vector<1x16x8xf32>
    %8 = arith.addf %5, %7 : vector<1x16x8xf32>
    %cst = arith.constant 0.000000e+00 : f32
    %9 = vector.broadcast %cst : f32 to vector<1x16x8xf32>
    %10 = arith.maximumf %8, %9 : vector<1x16x8xf32>
    %11 = vector.shape_cast %10 : vector<1x16x8xf32> to vector<16x8xf32>
    %c0_6 = arith.constant 0 : index
    %c0_7 = arith.constant 0 : index
    %12 = vector.load %arg4[%c0_6, %c0_7] : memref<8x8xf32, #tpu.memory_space<vmem>>, vector<8x8xf32>
    %cst_8 = arith.constant dense<0.000000e+00> : vector<16x8xf32>
    %13 = tpu.matmul %11, %12, %cst_8 {dimension_numbers = #tpu.dot_dimension_numbers<[1], [0], [0], [1], [0, 0, 1, 1], [], []>} : vector<16x8xf32>, vector<8x8xf32>, vector<16x8xf32> -> vector<16x8xf32>
    %c0_9 = arith.constant 0 : index
    %c0_10 = arith.constant 0 : index
    %14 = vector.load %arg5[%c0_9, %c0_10] : memref<1x8xf32, #tpu.memory_space<vmem>>, vector<1x8xf32>
    %15 = vector.broadcast %14 : vector<1x8xf32> to vector<16x8xf32>
    %16 = arith.addf %13, %15 : vector<16x8xf32>
    %cst_11 = arith.constant 0.000000e+00 : f32
    %17 = vector.broadcast %cst_11 : f32 to vector<16x8xf32>
    %18 = arith.maximumf %16, %17 : vector<16x8xf32>
    %cst_12 = arith.constant 0.000000e+00 : f32
    %19 = vector.broadcast %cst_12 : f32 to vector<1x1x8xf32>
    %c0_13 = arith.constant 0 : index
    %c7 = arith.constant 7 : index
    %c0_14 = arith.constant 0 : index
    %20 = vector.load %arg11[%c0_13, %c7, %c0_14] : memref<1x32x8xf32, #tpu.memory_space<vmem>>, vector<1x1x8xf32>
    tpu.vector_store %arg11[%c0_13, %c7, %c0_14], %19 {strides = array<i32>} : memref<1x32x8xf32, #tpu.memory_space<vmem>>, vector<1x1x8xf32>,
    %c0_15 = arith.constant 0 : index
    %c24 = arith.constant 24 : index
    %c0_16 = arith.constant 0 : index
    %21 = vector.load %arg11[%c0_15, %c24, %c0_16] : memref<1x32x8xf32, #tpu.memory_space<vmem>>, vector<1x1x8xf32>
    tpu.vector_store %arg11[%c0_15, %c24, %c0_16], %19 {strides = array<i32>} : memref<1x32x8xf32, #tpu.memory_space<vmem>>, vector<1x1x8xf32>,
    %22 = vector.shape_cast %18 : vector<16x8xf32> to vector<1x16x8xf32>
    %c0_17 = arith.constant 0 : index
    %c8 = arith.constant 8 : index
    %c0_18 = arith.constant 0 : index
    %23 = vector.load %arg11[%c0_17, %c8, %c0_18] : memref<1x32x8xf32, #tpu.memory_space<vmem>>, vector<1x16x8xf32>
    tpu.vector_store %arg11[%c0_17, %c8, %c0_18], %22 {strides = array<i32>} : memref<1x32x8xf32, #tpu.memory_space<vmem>>, vector<1x16x8xf32>,
    %c0_19 = arith.constant 0 : index
    %c7_20 = arith.constant 7 : index
    %c0_21 = arith.constant 0 : index
    %24 = tpu.strided_load %arg11[%c0_19, %c7_20, %c0_21] {strides = array<i32: 1, 2, 1>} : memref<1x32x8xf32, #tpu.memory_space<vmem>>, vector<1x8x8xf32>
    %25 = vector.shape_cast %24 : vector<1x8x8xf32> to vector<8x8xf32>
    %c0_22 = arith.constant 0 : index
    %c8_23 = arith.constant 8 : index
    %c0_24 = arith.constant 0 : index
    %26 = tpu.strided_load %arg11[%c0_22, %c8_23, %c0_24] {strides = array<i32: 1, 2, 1>} : memref<1x32x8xf32, #tpu.memory_space<vmem>>, vector<1x8x8xf32>
    %27 = vector.shape_cast %26 : vector<1x8x8xf32> to vector<8x8xf32>
    %c0_25 = arith.constant 0 : index
    %c9 = arith.constant 9 : index
    %c0_26 = arith.constant 0 : index
    %28 = tpu.strided_load %arg11[%c0_25, %c9, %c0_26] {strides = array<i32: 1, 2, 1>} : memref<1x32x8xf32, #tpu.memory_space<vmem>>, vector<1x8x8xf32>
    %29 = vector.shape_cast %28 : vector<1x8x8xf32> to vector<8x8xf32>
    %cst_27 = arith.constant 0.000000e+00 : f32
    %30 = vector.broadcast %cst_27 : f32 to vector<8x8xf32>
    %c0_28 = arith.constant 0 : index
    %c0_29 = arith.constant 0 : index
    %c0_30 = arith.constant 0 : index
    %31 = vector.load %arg6[%c0_28, %c0_29, %c0_30] : memref<3x8x8xf32, #tpu.memory_space<vmem>>, vector<1x8x8xf32>
    %32 = vector.shape_cast %31 : vector<1x8x8xf32> to vector<8x8xf32>
    %cst_31 = arith.constant dense<0.000000e+00> : vector<8x8xf32>
    %33 = tpu.matmul %25, %32, %cst_31 {dimension_numbers = #tpu.dot_dimension_numbers<[1], [0], [0], [1], [0, 0, 1, 1], [], []>} : vector<8x8xf32>, vector<8x8xf32>, vector<8x8xf32> -> vector<8x8xf32>
    %34 = arith.addf %30, %33 : vector<8x8xf32>
    %c1 = arith.constant 1 : index
    %c0_32 = arith.constant 0 : index
    %c0_33 = arith.constant 0 : index
    %35 = vector.load %arg6[%c1, %c0_32, %c0_33] : memref<3x8x8xf32, #tpu.memory_space<vmem>>, vector<1x8x8xf32>
    %36 = vector.shape_cast %35 : vector<1x8x8xf32> to vector<8x8xf32>
    %cst_34 = arith.constant dense<0.000000e+00> : vector<8x8xf32>
    %37 = tpu.matmul %27, %36, %cst_34 {dimension_numbers = #tpu.dot_dimension_numbers<[1], [0], [0], [1], [0, 0, 1, 1], [], []>} : vector<8x8xf32>, vector<8x8xf32>, vector<8x8xf32> -> vector<8x8xf32>
    %38 = arith.addf %34, %37 : vector<8x8xf32>
    %c2 = arith.constant 2 : index
    %c0_35 = arith.constant 0 : index
    %c0_36 = arith.constant 0 : index
    %39 = vector.load %arg6[%c2, %c0_35, %c0_36] : memref<3x8x8xf32, #tpu.memory_space<vmem>>, vector<1x8x8xf32>
    %40 = vector.shape_cast %39 : vector<1x8x8xf32> to vector<8x8xf32>
    %cst_37 = arith.constant dense<0.000000e+00> : vector<8x8xf32>
    %41 = tpu.matmul %29, %40, %cst_37 {dimension_numbers = #tpu.dot_dimension_numbers<[1], [0], [0], [1], [0, 0, 1, 1], [], []>} : vector<8x8xf32>, vector<8x8xf32>, vector<8x8xf32> -> vector<8x8xf32>
    %42 = arith.addf %38, %41 : vector<8x8xf32>
    %c0_38 = arith.constant 0 : index
    %c0_39 = arith.constant 0 : index
    %43 = vector.load %arg7[%c0_38, %c0_39] : memref<1x8xf32, #tpu.memory_space<vmem>>, vector<1x8xf32>
    %44 = vector.broadcast %43 : vector<1x8xf32> to vector<8x8xf32>
    %45 = arith.addf %42, %44 : vector<8x8xf32>
    %cst_40 = arith.constant 0.000000e+00 : f32
    %46 = vector.broadcast %cst_40 : f32 to vector<8x8xf32>
    %47 = arith.maximumf %45, %46 : vector<8x8xf32>
    %c0_41 = arith.constant 0 : index
    %c0_42 = arith.constant 0 : index
    %48 = vector.load %arg8[%c0_41, %c0_42] : memref<8x32xf32, #tpu.memory_space<vmem>>, vector<8x32xf32>
    %cst_43 = arith.constant dense<0.000000e+00> : vector<8x32xf32>
    %49 = tpu.matmul %47, %48, %cst_43 {dimension_numbers = #tpu.dot_dimension_numbers<[1], [0], [0], [1], [0, 0, 1, 1], [], []>} : vector<8x8xf32>, vector<8x32xf32>, vector<8x32xf32> -> vector<8x32xf32>
    %c0_44 = arith.constant 0 : index
    %c0_45 = arith.constant 0 : index
    %c0_46 = arith.constant 0 : index
    %50 = tpu.strided_load %arg1[%c0_44, %c0_45, %c0_46] {strides = array<i32: 1, 2, 1>} : memref<1x16x8xf32, #tpu.memory_space<vmem>>, vector<1x8x8xf32>
    %51 = vector.shape_cast %1 : vector<1x8xf32> to vector<1x1x8xf32>
    %52 = vector.broadcast %51 : vector<1x1x8xf32> to vector<1x8x8xf32>
    %53 = arith.mulf %50, %52 : vector<1x8x8xf32>
    %54 = vector.shape_cast %2 : vector<1x8xf32> to vector<1x1x8xf32>
    %55 = vector.broadcast %54 : vector<1x1x8xf32> to vector<1x8x8xf32>
    %56 = arith.addf %53, %55 : vector<1x8x8xf32>
    %cst_47 = arith.constant 0.000000e+00 : f32
    %57 = vector.broadcast %cst_47 : f32 to vector<1x8x8xf32>
    %58 = arith.maximumf %56, %57 : vector<1x8x8xf32>
    %59 = vector.shape_cast %58 : vector<1x8x8xf32> to vector<8x8xf32>
    %c0_48 = arith.constant 0 : index
    %c0_49 = arith.constant 0 : index
    %60 = vector.load %arg9[%c0_48, %c0_49] : memref<8x32xf32, #tpu.memory_space<vmem>>, vector<8x32xf32>
    %cst_50 = arith.constant dense<0.000000e+00> : vector<8x32xf32>
    %61 = tpu.matmul %59, %60, %cst_50 {dimension_numbers = #tpu.dot_dimension_numbers<[1], [0], [0], [1], [0, 0, 1, 1], [], []>} : vector<8x8xf32>, vector<8x32xf32>, vector<8x32xf32> -> vector<8x32xf32>
    %62 = arith.addf %49, %61 : vector<8x32xf32>
    %63 = vector.shape_cast %62 : vector<8x32xf32> to vector<1x8x32xf32>
    %c0_51 = arith.constant 0 : index
    %c0_52 = arith.constant 0 : index
    %c0_53 = arith.constant 0 : index
    %64 = vector.load %arg10[%c0_51, %c0_52, %c0_53] : memref<1x8x32xf32, #tpu.memory_space<vmem>>, vector<1x8x32xf32>
    tpu.vector_store %arg10[%c0_51, %c0_52, %c0_53], %63 {strides = array<i32>} : memref<1x8x32xf32, #tpu.memory_space<vmem>>, vector<1x8x32xf32>,
    return
  }
  func.func @transform_0(%arg0: i32) -> (i32, i32, i32) {
    %c0_i32 = arith.constant 0 : i32
    %c0_i32_0 = arith.constant 0 : i32
    %c0_i32_1 = arith.constant 0 : i32
    return %arg0, %c0_i32, %c0_i32_0 : i32, i32, i32
  }
  func.func @transform_1(%arg0: i32) -> (i32, i32) {
    %c0_i32 = arith.constant 0 : i32
    %c0_i32_0 = arith.constant 0 : i32
    %c0_i32_1 = arith.constant 0 : i32
    return %c0_i32, %c0_i32_0 : i32, i32
  }
  func.func @transform_2(%arg0: i32) -> (i32, i32) {
    %c0_i32 = arith.constant 0 : i32
    %c0_i32_0 = arith.constant 0 : i32
    %c0_i32_1 = arith.constant 0 : i32
    return %c0_i32, %c0_i32_0 : i32, i32
  }
  func.func @transform_3(%arg0: i32) -> (i32, i32) {
    %c0_i32 = arith.constant 0 : i32
    %c0_i32_0 = arith.constant 0 : i32
    %c0_i32_1 = arith.constant 0 : i32
    return %c0_i32, %c0_i32_0 : i32, i32
  }
  func.func @transform_4(%arg0: i32) -> (i32, i32) {
    %c0_i32 = arith.constant 0 : i32
    %c0_i32_0 = arith.constant 0 : i32
    %c0_i32_1 = arith.constant 0 : i32
    return %c0_i32, %c0_i32_0 : i32, i32
  }
  func.func @transform_5(%arg0: i32) -> (i32, i32, i32) {
    %c0_i32 = arith.constant 0 : i32
    %c0_i32_0 = arith.constant 0 : i32
    %c0_i32_1 = arith.constant 0 : i32
    %c0_i32_2 = arith.constant 0 : i32
    return %c0_i32, %c0_i32_0, %c0_i32_1 : i32, i32, i32
  }
  func.func @transform_6(%arg0: i32) -> (i32, i32) {
    %c0_i32 = arith.constant 0 : i32
    %c0_i32_0 = arith.constant 0 : i32
    %c0_i32_1 = arith.constant 0 : i32
    return %c0_i32, %c0_i32_0 : i32, i32
  }
  func.func @transform_7(%arg0: i32) -> (i32, i32) {
    %c0_i32 = arith.constant 0 : i32
    %c0_i32_0 = arith.constant 0 : i32
    %c0_i32_1 = arith.constant 0 : i32
    return %c0_i32, %c0_i32_0 : i32, i32
  }
  func.func @transform_8(%arg0: i32) -> (i32, i32) {
    %c0_i32 = arith.constant 0 : i32
    %c0_i32_0 = arith.constant 0 : i32
    %c0_i32_1 = arith.constant 0 : i32
    return %c0_i32, %c0_i32_0 : i32, i32
  }
  func.func @transform_9(%arg0: i32) -> (i32, i32, i32) {
    %c0_i32 = arith.constant 0 : i32
    %c0_i32_0 = arith.constant 0 : i32
    %c0_i32_1 = arith.constant 0 : i32
    return %arg0, %c0_i32, %c0_i32_0 : i32, i32, i32
  }
}

</mosaic_0001>

<llo_original>
// kernel: tpu_custom_call.1
$region0: #{tpu_custom_call.1}
  #allocation0 [shape = 'u32[]', space=smem, size = 0x4, offset = 0x4, fixed_abs, tag = 'smem constant byte address 0x4 - core index']
  #allocation1 [shape = 'u32[72,128]{1,0:T(1,128)}', space=vmem, size = 0x9000, scoped, tag = 'internal scratch']
  #allocation2 [shape = 'f32[1,32,8]{2,1,0:T(8,128)}', space=vmem, size = 0x4000, scoped, tag = 'scratch operand']
  %s0 = inlined_call_operand.vmem [shape: f32[2,16,8], index: 0, kind: input, shape index: {}]
  %s1 = inlined_call_operand.hbm [shape: f32[1,8], index: 1, kind: input, shape index: {}]
  %s2 = inlined_call_operand.vmem [shape: f32[1,8], index: 2, kind: input, shape index: {}]
  %s3 = inlined_call_operand.vmem [shape: f32[8,8], index: 3, kind: input, shape index: {}]
  %s4 = inlined_call_operand.vmem [shape: f32[1,8], index: 4, kind: input, shape index: {}]
  %s5 = inlined_call_operand.vmem [shape: f32[3,8,8], index: 5, kind: input, shape index: {}]
  %s6 = inlined_call_operand.vmem [shape: f32[1,8], index: 6, kind: input, shape index: {}]
  %s7 = inlined_call_operand.vmem [shape: f32[8,32], index: 7, kind: input, shape index: {}]
  %s8 = inlined_call_operand.vmem [shape: f32[8,32], index: 8, kind: input, shape index: {}]
  %s9 = inlined_call_operand.hbm [shape: f32[2,8,32], index: 9, kind: output, shape index: {}]
  %s10 = sld [smem:[#allocation0]]
  $region73: #{tpu_custom_call.1} parent=0
    _
  %s12 = ssub.s32 1, %s10
  %s13 = scalar_select 0, %s12, %s10
  $region1: #{tpu_custom_call.1} parent=0
    #allocation3 [shape = 'u8[512]{0}', space=vmem, size = 0x400, scoped, tag = 'input window, operand 1, single buffered']
    #allocation4 [shape = 's32[2]{0}', space=sflag, size = 0x8, scoped, tag = 'scoped memory for tpu_custom_call.1']
    #allocation5 [shape = 's32[2]{0}', space=sflag, size = 0x8, scoped, tag = 'scoped memory for tpu_custom_call.1']
    #allocation6 [shape = 'u8[8192]{0}', space=vmem, size = 0x2000, scoped, tag = 'output window, operand 0']
    %14 = vsyncpa [#allocation4], 0
    %15 = vsyncpa [#allocation5], 0
    %s16 = scalar_lea.sflag [#allocation5], 1
    %17 = vsyncpa %s16, 0
    loop: start=0, step=1, limit=4
    $region2: #{tpu_custom_call.1} parent=1 // loop_pre_header
      _
    $region3: #{tpu_custom_call.1} parent=1 // loop_header
      %s19 = sphi 0, %s23
      %p20 = scmp.ge.s32.totalorder %s19, 4
      %s29 = sphi 0, %s31
      %s32 = sphi 0, %s29
      %s33 = sphi 0, %s32
      %s49 = sphi 0, %s33
      %s53 = sphi 0, %s53
      %s55 = sphi 0, %s53
      %s56 = sphi 0, %s55
      %s70 = sphi 0, %s56
      %s74 = sphi 0, %s74
      %s76 = sphi 0, %s74
      %s77 = sphi 0, %s76
      %s91 = sphi 0, %s77
      %s95 = sphi 0, %s95
      %s97 = sphi 0, %s95
      %s98 = sphi 0, %s97
      %s112 = sphi 0, %s98
      %s116 = sphi 0, %s116
      %s118 = sphi 0, %s116
      %s119 = sphi 0, %s118
      %s133 = sphi 0, %s119
      %s137 = sphi 0, %s137
      %s139 = sphi 0, %s137
      %s140 = sphi 0, %s139
      %s154 = sphi 0, %s140
      %s158 = sphi 0, %s158
      %s160 = sphi 0, %s158
      %s161 = sphi 0, %s160
      %s175 = sphi 0, %s161
      %s179 = sphi 0, %s179
      %s181 = sphi 0, %s179
      %s182 = sphi 0, %s181
      %s196 = sphi 0, %s182
      %s200 = sphi 0, %s200
      %s202 = sphi 0, %s200
      %s203 = sphi 0, %s202
      %s217 = sphi 0, %s203
      %s223 = sphi 0, %s225
      %s226 = sphi 0, %s223
      %s227 = sphi 0, %s226
      %s243 = sphi 0, %s227
    $region4: #{tpu_custom_call.1} parent=1 // loop_header_branch
      %22 = sbr.rel (%p20) target = $region8
    $region5: #{tpu_custom_call.1} parent=1 // loop_body
      %s24 = ssub.s32 %s19, 1
      %s25 = ssub.s32 %s19, 2
      %s26 = sadd.s32 %s19, 1
      %s27 = ssub.s32 %s19, %s26
      %p28 = scmp.eq.s32.totalorder %s27, 0
      %s30 = sadd.s32 %s29, 1
      %s31 = scalar_select %p28, %s29, %s30
      %p34 = pneg %p28
      %p35 = scmp.eq.s32.totalorder %s19, 1
      %p36 = por %p34, %p35
      %p37 = scmp.ne.s32.totalorder %s29, %s32
      %p38 = scmp.eq.s32.totalorder %s19, 0
      %p39 = por %p37, %p38
      %p40 = scmp.ne.s32.totalorder %s29, %s32
      %p41 = scmp.eq.s32.totalorder %s24, 1
      %p42 = por %p40, %p41
      %p43 = scmp.ne.s32.totalorder %s32, %s33
      %p44 = scmp.eq.s32.totalorder %s24, 0
      %p45 = por %p43, %p44
      %p46 = scmp.ne.s32.totalorder %s32, %s33
      %p47 = scmp.eq.s32.totalorder %s25, 1
      %p48 = por %p46, %p47
      %p50 = scmp.ne.s32.totalorder %s33, %s49
      %p51 = scmp.eq.s32.totalorder %s25, 0
      %p52 = por %p50, %p51
      %s54 = sadd.s32 %s53, 1
      %p57 = scmp.eq.s32.totalorder %s19, 1
      %p58 = scmp.ne.s32.totalorder %s53, %s55
      %p59 = scmp.eq.s32.totalorder %s19, 0
      %p60 = por %p58, %p59
      %p61 = scmp.ne.s32.totalorder %s53, %s55
      %p62 = scmp.eq.s32.totalorder %s24, 1
      %p63 = por %p61, %p62
      %p64 = scmp.ne.s32.totalorder %s55, %s56
      %p65 = scmp.eq.s32.totalorder %s24, 0
      %p66 = por %p64, %p65
      %p67 = scmp.ne.s32.totalorder %s55, %s56
      %p68 = scmp.eq.s32.totalorder %s25, 1
      %p69 = por %p67, %p68
      %p71 = scmp.ne.s32.totalorder %s56, %s70
      %p72 = scmp.eq.s32.totalorder %s25, 0
      %p73 = por %p71, %p72
      %s75 = sadd.s32 %s74, 1
      %p78 = scmp.eq.s32.totalorder %s19, 1
      %p79 = scmp.ne.s32.totalorder %s74, %s76
      %p80 = scmp.eq.s32.totalorder %s19, 0
      %p81 = por %p79, %p80
      %p82 = scmp.ne.s32.totalorder %s74, %s76
      %p83 = scmp.eq.s32.totalorder %s24, 1
      %p84 = por %p82, %p83
      %p85 = scmp.ne.s32.totalorder %s76, %s77
      %p86 = scmp.eq.s32.totalorder %s24, 0
      %p87 = por %p85, %p86
      %p88 = scmp.ne.s32.totalorder %s76, %s77
      %p89 = scmp.eq.s32.totalorder %s25, 1
      %p90 = por %p88, %p89
      %p92 = scmp.ne.s32.totalorder %s77, %s91
      %p93 = scmp.eq.s32.totalorder %s25, 0
      %p94 = por %p92, %p93
      %s96 = sadd.s32 %s95, 1
      %p99 = scmp.eq.s32.totalorder %s19, 1
      %p100 = scmp.ne.s32.totalorder %s95, %s97
      %p101 = scmp.eq.s32.totalorder %s19, 0
      %p102 = por %p100, %p101
      %p103 = scmp.ne.s32.totalorder %s95, %s97
      %p104 = scmp.eq.s32.totalorder %s24, 1
      %p105 = por %p103, %p104
      %p106 = scmp.ne.s32.totalorder %s97, %s98
      %p107 = scmp.eq.s32.totalorder %s24, 0
      %p108 = por %p106, %p107
      %p109 = scmp.ne.s32.totalorder %s97, %s98
      %p110 = scmp.eq.s32.totalorder %s25, 1
      %p111 = por %p109, %p110
      %p113 = scmp.ne.s32.totalorder %s98, %s112
      %p114 = scmp.eq.s32.totalorder %s25, 0
      %p115 = por %p113, %p114
      %s117 = sadd.s32 %s116, 1
      %p120 = scmp.eq.s32.totalorder %s19, 1
      %p121 = scmp.ne.s32.totalorder %s116, %s118
      %p122 = scmp.eq.s32.totalorder %s19, 0
      %p123 = por %p121, %p122
      %p124 = scmp.ne.s32.totalorder %s116, %s118
      %p125 = scmp.eq.s32.totalorder %s24, 1
      %p126 = por %p124, %p125
      %p127 = scmp.ne.s32.totalorder %s118, %s119
      %p128 = scmp.eq.s32.totalorder %s24, 0
      %p129 = por %p127, %p128
      %p130 = scmp.ne.s32.totalorder %s118, %s119
      %p131 = scmp.eq.s32.totalorder %s25, 1
      %p132 = por %p130, %p131
      %p134 = scmp.ne.s32.totalorder %s119, %s133
      %p135 = scmp.eq.s32.totalorder %s25, 0
      %p136 = por %p134, %p135
      %s138 = sadd.s32 %s137, 1
      %p141 = scmp.eq.s32.totalorder %s19, 1
      %p142 = scmp.ne.s32.totalorder %s137, %s139
      %p143 = scmp.eq.s32.totalorder %s19, 0
      %p144 = por %p142, %p143
      %p145 = scmp.ne.s32.totalorder %s137, %s139
      %p146 = scmp.eq.s32.totalorder %s24, 1
      %p147 = por %p145, %p146
      %p148 = scmp.ne.s32.totalorder %s139, %s140
      %p149 = scmp.eq.s32.totalorder %s24, 0
      %p150 = por %p148, %p149
      %p151 = scmp.ne.s32.totalorder %s139, %s140
      %p152 = scmp.eq.s32.totalorder %s25, 1
      %p153 = por %p151, %p152
      %p155 = scmp.ne.s32.totalorder %s140, %s154
      %p156 = scmp.eq.s32.totalorder %s25, 0
      %p157 = por %p155, %p156
      %s159 = sadd.s32 %s158, 1
      %p162 = scmp.eq.s32.totalorder %s19, 1
      %p163 = scmp.ne.s32.totalorder %s158, %s160
      %p164 = scmp.eq.s32.totalorder %s19, 0
      %p165 = por %p163, %p164
      %p166 = scmp.ne.s32.totalorder %s158, %s160
      %p167 = scmp.eq.s32.totalorder %s24, 1
      %p168 = por %p166, %p167
      %p169 = scmp.ne.s32.totalorder %s160, %s161
      %p170 = scmp.eq.s32.totalorder %s24, 0
      %p171 = por %p169, %p170
      %p172 = scmp.ne.s32.totalorder %s160, %s161
      %p173 = scmp.eq.s32.totalorder %s25, 1
      %p174 = por %p172, %p173
      %p176 = scmp.ne.s32.totalorder %s161, %s175
      %p177 = scmp.eq.s32.totalorder %s25, 0
      %p178 = por %p176, %p177
      %s180 = sadd.s32 %s179, 1
      %p183 = scmp.eq.s32.totalorder %s19, 1
      %p184 = scmp.ne.s32.totalorder %s179, %s181
      %p185 = scmp.eq.s32.totalorder %s19, 0
      %p186 = por %p184, %p185
      %p187 = scmp.ne.s32.totalorder %s179, %s181
      %p188 = scmp.eq.s32.totalorder %s24, 1
      %p189 = por %p187, %p188
      %p190 = scmp.ne.s32.totalorder %s181, %s182
      %p191 = scmp.eq.s32.totalorder %s24, 0
      %p192 = por %p190, %p191
      %p193 = scmp.ne.s32.totalorder %s181, %s182
      %p194 = scmp.eq.s32.totalorder %s25, 1
      %p195 = por %p193, %p194
      %p197 = scmp.ne.s32.totalorder %s182, %s196
      %p198 = scmp.eq.s32.totalorder %s25, 0
      %p199 = por %p197, %p198
      %s201 = sadd.s32 %s200, 1
      %p204 = scmp.eq.s32.totalorder %s19, 1
      %p205 = scmp.ne.s32.totalorder %s200, %s202
      %p206 = scmp.eq.s32.totalorder %s19, 0
      %p207 = por %p205, %p206
      %p208 = scmp.ne.s32.totalorder %s200, %s202
      %p209 = scmp.eq.s32.totalorder %s24, 1
      %p210 = por %p208, %p209
      %p211 = scmp.ne.s32.totalorder %s202, %s203
      %p212 = scmp.eq.s32.totalorder %s24, 0
      %p213 = por %p211, %p212
      %p214 = scmp.ne.s32.totalorder %s202, %s203
      %p215 = scmp.eq.s32.totalorder %s25, 1
      %p216 = por %p214, %p215
      %p218 = scmp.ne.s32.totalorder %s203, %s217
      %p219 = scmp.eq.s32.totalorder %s25, 0
      %p220 = por %p218, %p219
      %s221 = ssub.s32 %s19, %s26
      %p222 = scmp.eq.s32.totalorder %s221, 0
      %s224 = sadd.s32 %s223, 1
      %s225 = scalar_select %p222, %s223, %s224
      %p228 = pneg %p222
      %p229 = scmp.eq.s32.totalorder %s19, 1
      %p230 = por %p228, %p229
      %p231 = scmp.ne.s32.totalorder %s223, %s226
      %p232 = scmp.eq.s32.totalorder %s19, 0
      %p233 = por %p231, %p232
      %p234 = scmp.ne.s32.totalorder %s223, %s226
      %p235 = scmp.eq.s32.totalorder %s24, 1
      %p236 = por %p234, %p235
      %p237 = scmp.ne.s32.totalorder %s226, %s227
      %p238 = scmp.eq.s32.totalorder %s24, 0
      %p239 = por %p237, %p238
      %p240 = scmp.ne.s32.totalorder %s226, %s227
      %p241 = scmp.eq.s32.totalorder %s25, 1
      %p242 = por %p240, %p241
      %p244 = scmp.ne.s32.totalorder %s227, %s243
      %p245 = scmp.eq.s32.totalorder %s25, 0
      %p246 = por %p244, %p245
      %p247 = scmp.le.s32.totalorder 1, %s19
      %p248 = scmp.lt.s32.totalorder %s19, 3
      %p249 = pnand %p247, %p248
      %p250 = pneg %p249
      // Predicated region
      $region9: #{tpu_custom_call.1} parent=5 // pred_check
        _
      $region10: #{tpu_custom_call.1} parent=5 // pred_check_branch
        %252 = sbr.rel (%p249) target = $region12
      $region11: #{tpu_custom_call.1} parent=5 // pred_region
        %s253 = ssub.s32 %s19, 1
        // Predicated region
        $region13: #{tpu_custom_call.1} parent=11 // pred_check
          %p254 = pneg %p66
        $region14: #{tpu_custom_call.1} parent=11 // pred_check_branch
          %256 = sbr.rel (%p254) target = $region16
        $region15: #{tpu_custom_call.1} parent=11 // pred_region
          %258 = vsyncadd [#allocation4], 0
          %s260 = sshll.u32 %s1, 4
          %s261 = int_to_ptr.hbm [resolvable:$true] %s260
          %s262 = sshll.u32 [#allocation3], 4
          %s263 = int_to_ptr.vmem [resolvable:$true] %s262
          %265 = dma.hbm_to_vmem [thread:$0]  %s261, 16, %s263, [#allocation4]
        $region16: #{tpu_custom_call.1} parent=11 // pred_fallthru
          _
        // Predicated region
        $region17: #{tpu_custom_call.1} parent=11 // pred_check
          %p266 = pneg %p87
        $region18: #{tpu_custom_call.1} parent=11 // pred_check_branch
          %268 = sbr.rel (%p266) target = $region20
        $region19: #{tpu_custom_call.1} parent=11 // pred_region
          _
        $region20: #{tpu_custom_call.1} parent=11 // pred_fallthru
          _
        // Predicated region
        $region21: #{tpu_custom_call.1} parent=11 // pred_check
          %p269 = pneg %p108
        $region22: #{tpu_custom_call.1} parent=11 // pred_check_branch
          %271 = sbr.rel (%p269) target = $region24
        $region23: #{tpu_custom_call.1} parent=11 // pred_region
          _
        $region24: #{tpu_custom_call.1} parent=11 // pred_fallthru
          _
        // Predicated region
        $region25: #{tpu_custom_call.1} parent=11 // pred_check
          %p272 = pneg %p129
        $region26: #{tpu_custom_call.1} parent=11 // pred_check_branch
          %274 = sbr.rel (%p272) target = $region28
        $region27: #{tpu_custom_call.1} parent=11 // pred_region
          _
        $region28: #{tpu_custom_call.1} parent=11 // pred_fallthru
          _
        // Predicated region
        $region29: #{tpu_custom_call.1} parent=11 // pred_check
          %p275 = pneg %p150
        $region30: #{tpu_custom_call.1} parent=11 // pred_check_branch
          %277 = sbr.rel (%p275) target = $region32
        $region31: #{tpu_custom_call.1} parent=11 // pred_region
          _
        $region32: #{tpu_custom_call.1} parent=11 // pred_fallthru
          _
        // Predicated region
        $region33: #{tpu_custom_call.1} parent=11 // pred_check
          %p278 = pneg %p171
        $region34: #{tpu_custom_call.1} parent=11 // pred_check_branch
          %280 = sbr.rel (%p278) target = $region36
        $region35: #{tpu_custom_call.1} parent=11 // pred_region
          _
        $region36: #{tpu_custom_call.1} parent=11 // pred_fallthru
          _
        // Predicated region
        $region37: #{tpu_custom_call.1} parent=11 // pred_check
          %p281 = pneg %p192
        $region38: #{tpu_custom_call.1} parent=11 // pred_check_branch
          %283 = sbr.rel (%p281) target = $region40
        $region39: #{tpu_custom_call.1} parent=11 // pred_region
          _
        $region40: #{tpu_custom_call.1} parent=11 // pred_fallthru
          _
        // Predicated region
        $region41: #{tpu_custom_call.1} parent=11 // pred_check
          %p284 = pneg %p213
        $region42: #{tpu_custom_call.1} parent=11 // pred_check_branch
          %286 = sbr.rel (%p284) target = $region44
        $region43: #{tpu_custom_call.1} parent=11 // pred_region
          _
        $region44: #{tpu_custom_call.1} parent=11 // pred_fallthru
          _
      $region12: #{tpu_custom_call.1} parent=5 // pred_fallthru
        _
      %p287 = scmp.lt.s32.totalorder %s19, 2
      // Predicated region
      $region45: #{tpu_custom_call.1} parent=5 // pred_check
        %p288 = pneg %p287
      $region46: #{tpu_custom_call.1} parent=5 // pred_check_branch
        %290 = sbr.rel (%p288) target = $region48
      $region47: #{tpu_custom_call.1} parent=5 // pred_region
        // Predicated region
        $region49: #{tpu_custom_call.1} parent=47 // pred_check
          %p291 = pneg %p39
        $region50: #{tpu_custom_call.1} parent=47 // pred_check_branch
          %293 = sbr.rel (%p291) target = $region52
        $region51: #{tpu_custom_call.1} parent=47 // pred_region
          %p294 = scmp.lt.s32.totalorder %s19, 1
          %s295 = scalar_select %p294, %s19, 1
          %s296 = smul.addr %s295, 2
          %s297 = smul.addr %s296, 8
          %s298 = scalar_lea.vmem %s0, %s297
        $region52: #{tpu_custom_call.1} parent=47 // pred_fallthru
          _
      $region48: #{tpu_custom_call.1} parent=5 // pred_fallthru
        _
      %p299 = scmp.le.s32.totalorder 1, %s19
      %p300 = scmp.lt.s32.totalorder %s19, 3
      %p301 = pnand %p299, %p300
      %p302 = pneg %p301
      // Predicated region
      $region53: #{tpu_custom_call.1} parent=5 // pred_check
        _
      $region54: #{tpu_custom_call.1} parent=5 // pred_check_branch
        %304 = sbr.rel (%p301) target = $region56
      $region55: #{tpu_custom_call.1} parent=5 // pred_region
        %s305 = ssub.s32 %s19, 1
        // Predicated region
        $region57: #{tpu_custom_call.1} parent=55 // pred_check
          %p306 = pneg %p66
        $region58: #{tpu_custom_call.1} parent=55 // pred_check_branch
          %308 = sbr.rel (%p306) target = $region60
        $region59: #{tpu_custom_call.1} parent=55 // pred_region
          %310 = dma.done [#allocation4], 16
        $region60: #{tpu_custom_call.1} parent=55 // pred_fallthru
          _
        %p311 = scmp.lt.s32.totalorder %s24, 1
        %s312 = scalar_select %p311, %s24, 1
        %s313 = smul.addr %s312, 2
        %s314 = smul.addr %s313, 8
        %s315 = scalar_lea.vmem %s0, %s314
        %p316 = pneg %p45
        %p317 = pneg %p42
        %p318 = pneg %p66
        %p319 = pneg %p63
        %p320 = pneg %p87
        %p321 = pneg %p84
        %p322 = pneg %p108
        %p323 = pneg %p105
        %p324 = pneg %p129
        %p325 = pneg %p126
        %p326 = pneg %p150
        %p327 = pneg %p147
        %p328 = pneg %p171
        %p329 = pneg %p168
        %p330 = pneg %p192
        %p331 = pneg %p189
        %p332 = pneg %p213
        %p333 = pneg %p210
        %p334 = pneg %p239
        %p335 = pneg %p236
        %s336 = sand.u32 %s226, 1
        %s337 = scalar_lea.sflag [#allocation5], %s336
        %s338 = sand.u32 %s226, 1
        %s339 = smul.addr %s338, 8
        %s340 = scalar_lea.vmem [#allocation6], %s339
        %p341 = scmp.lt.s32.totalorder %s24, 1
        %s342 = scalar_select %p341, %s24, 1
        %s343 = smul.addr %s342, 2
        %s344 = smul.addr %s343, 8
        %s345 = scalar_lea.vmem %s0, %s344
        %v346 = vld [vmem:[%s345] sm:$0xff]
        %v347 = vld [vmem:[%s345 + $0x8] sm:$0xff]
        %v348 = vld [vmem:[#allocation3] sm:$0x1]
        %v349 = vld [vmem:[%s2] sm:$0x1]
        %v351 = vperm.slane %v348, 0
        %v353 = vmul.f32 %v346, %v351
        %v354 = vmul.f32 %v347, %v351
        %v356 = vperm.slane %v349, 0
        %v358 = vadd.f32 %v353, %v356
        %v359 = vadd.f32 %v354, %v356
        %v360 = vmax.f32 %v358, 0.0
        %v361 = vmax.f32 %v359, 0.0
        %v362 = vld [vmem:[%s3] sm:$0xff]
        %v363 = vld [vmem:[%s4] sm:$0x1]
        %v365 = vperm.slane %v363, 0
        %vm367 = vcmask 64512
        %v369 = vsel %vm367, %v360, 0
        %v372 = vsel %vm367, %v361, 0
        %374 = vmatpush.msra.mxu0 0.0
        %375 = vmatpush.msra.mxu0 0.0
        %376 = vmatpush.msra.mxu0 0.0
        %377 = vmatpush.msra.mxu0 0.0
        %378 = vmatpush.msra.mxu0 0.0
        %379 = vmatpush.msra.mxu0 0.0
        %380 = vmatpush.msra.mxu0 0.0
        %381 = vmatpush.msra.mxu0 0.0
        %382 = vmatpush.msra.mxu0 0.0
        %383 = vmatpush.msra.mxu0 0.0
        %384 = vmatpush.msra.mxu0 0.0
        %385 = vmatpush.msra.mxu0 0.0
        %386 = vmatpush.msra.mxu0 0.0
        %387 = vmatpush.msra.mxu0 0.0
        %388 = vmatpush.msra.mxu0 0.0
        %389 = vmatpush.msra.mxu0 %v362
        %390 = vmatmul.f32.gmra.mxu0 %v369
        %v391 = vpop.f32.mrf.mxu0
        %v392 = vadd.f32 %v365, %v391
        %393 = vmatmul.f32.gmra.mxu0 %v372
        %v394 = vpop.f32.mrf.mxu0
        %v395 = vadd.f32 %v365, %v394
        %396 = vdwg.mxu0
        %v397 = vmax.f32 %v392, 0.0
        %v398 = vmax.f32 %v395, 0.0
        %vm399 = vcmask 57344
        %400 = vst.msk [vmem:[#allocation2 + $0x7] sm:$0x1] %vm399, 0.0
        %401 = vst.msk [vmem:[#allocation2 + $0x18] sm:$0x1] %vm399, 0.0
        %402 = vst.msk [vmem:[#allocation2 + $0x8] sm:$0xff] %vm367, %v397
        %403 = vst.msk [vmem:[#allocation2 + $0x10] sm:$0xff] %vm367, %v398
        %s404 = scalar_lea.vmem [#allocation2], 7
        %v405 = vld [vmem:[%s404] ss:$2 sm:$0xff]
        %s406 = scalar_lea.vmem [#allocation2], 8
        %v407 = vld [vmem:[%s406] ss:$2 sm:$0xff]
        %s408 = scalar_lea.vmem [#allocation2], 9
        %v409 = vld [vmem:[%s408] ss:$2 sm:$0xff]
        %v410 = vld [vmem:[%s5] sm:$0xff]
        %s411 = scalar_lea.vmem %s5, 8
        %v412 = vld [vmem:[%s411] sm:$0xff]
        %v414 = vsel %vm367, %v407, 0
        %416 = vmatpush.msra.mxu0 0.0
        %417 = vmatpush.msra.mxu0 0.0
        %418 = vmatpush.msra.mxu0 0.0
        %419 = vmatpush.msra.mxu0 0.0
        %420 = vmatpush.msra.mxu0 0.0
        %421 = vmatpush.msra.mxu0 0.0
        %422 = vmatpush.msra.mxu0 0.0
        %423 = vmatpush.msra.mxu0 0.0
        %424 = vmatpush.msra.mxu0 0.0
        %425 = vmatpush.msra.mxu0 0.0
        %426 = vmatpush.msra.mxu0 0.0
        %427 = vmatpush.msra.mxu0 0.0
        %428 = vmatpush.msra.mxu0 0.0
        %429 = vmatpush.msra.mxu0 0.0
        %430 = vmatpush.msra.mxu0 0.0
        %431 = vmatpush.msra.mxu0 %v412
        %432 = vmatmul.f32.gmra.mxu0 %v414
        %v433 = vpop.f32.mrf.mxu0
        %v434 = vadd.f32 0.0, %v433
        %435 = vdwg.mxu0
        %v437 = vsel %vm367, %v405, 0
        %439 = vmatpush.msra.mxu0 0.0
        %440 = vmatpush.msra.mxu0 0.0
        %441 = vmatpush.msra.mxu0 0.0
        %442 = vmatpush.msra.mxu0 0.0
        %443 = vmatpush.msra.mxu0 0.0
        %444 = vmatpush.msra.mxu0 0.0
        %445 = vmatpush.msra.mxu0 0.0
        %446 = vmatpush.msra.mxu0 0.0
        %447 = vmatpush.msra.mxu0 0.0
        %448 = vmatpush.msra.mxu0 0.0
        %449 = vmatpush.msra.mxu0 0.0
        %450 = vmatpush.msra.mxu0 0.0
        %451 = vmatpush.msra.mxu0 0.0
        %452 = vmatpush.msra.mxu0 0.0
        %453 = vmatpush.msra.mxu0 0.0
        %454 = vmatpush.msra.mxu0 %v410
        %455 = vmatmul.f32.gmra.mxu0 %v437
        %v456 = vpop.f32.mrf.mxu0
        %v457 = vadd.f32 %v434, %v456
        %458 = vdwg.mxu0
        %s459 = scalar_lea.vmem %s5, 16
        %v460 = vld [vmem:[%s459] sm:$0xff]
        %v462 = vsel %vm367, %v409, 0
        %464 = vmatpush.msra.mxu0 0.0
        %465 = vmatpush.msra.mxu0 0.0
        %466 = vmatpush.msra.mxu0 0.0
        %467 = vmatpush.msra.mxu0 0.0
        %468 = vmatpush.msra.mxu0 0.0
        %469 = vmatpush.msra.mxu0 0.0
        %470 = vmatpush.msra.mxu0 0.0
        %471 = vmatpush.msra.mxu0 0.0
        %472 = vmatpush.msra.mxu0 0.0
        %473 = vmatpush.msra.mxu0 0.0
        %474 = vmatpush.msra.mxu0 0.0
        %475 = vmatpush.msra.mxu0 0.0
        %476 = vmatpush.msra.mxu0 0.0
        %477 = vmatpush.msra.mxu0 0.0
        %478 = vmatpush.msra.mxu0 0.0
        %479 = vmatpush.msra.mxu0 %v460
        %480 = vmatmul.f32.gmra.mxu0 %v462
        %v481 = vpop.f32.mrf.mxu0
        %v482 = vadd.f32 0.0, %v481
        %483 = vdwg.mxu0
        %v484 = vadd.f32 %v457, %v482
        %v485 = vld [vmem:[%s6] sm:$0x1]
        %v487 = vperm.slane %v485, 0
        %v489 = vadd.f32 %v484, %v487
        %v490 = vmax.f32 %v489, 0.0
        %v491 = vld [vmem:[%s7] sm:$0xff]
        %v492 = vld [vmem:[%s345] ss:$2 sm:$0xff]
        %v493 = vmul.f32 %v492, %v351
        %v494 = vadd.f32 %v493, %v356
        %v495 = vmax.f32 %v494, 0.0
        %v496 = vld [vmem:[%s8] sm:$0xff]
        %v498 = vsel %vm367, %v495, 0
        %500 = vmatpush.msra.mxu0 0.0
        %501 = vmatpush.msra.mxu0 0.0
        %502 = vmatpush.msra.mxu0 0.0
        %503 = vmatpush.msra.mxu0 0.0
        %504 = vmatpush.msra.mxu0 0.0
        %505 = vmatpush.msra.mxu0 0.0
        %506 = vmatpush.msra.mxu0 0.0
        %507 = vmatpush.msra.mxu0 0.0
        %508 = vmatpush.msra.mxu0 0.0
        %509 = vmatpush.msra.mxu0 0.0
        %510 = vmatpush.msra.mxu0 0.0
        %511 = vmatpush.msra.mxu0 0.0
        %512 = vmatpush.msra.mxu0 0.0
        %513 = vmatpush.msra.mxu0 0.0
        %514 = vmatpush.msra.mxu0 0.0
        %515 = vmatpush.msra.mxu0 %v496
        %516 = vmatmul.f32.gmra.mxu0 %v498
        %v517 = vpop.f32.mrf.mxu0
        %v518 = vadd.f32 0.0, %v517
        %519 = vdwg.mxu0
        %v521 = vsel %vm367, %v490, 0
        %523 = vmatpush.msra.mxu0 0.0
        %524 = vmatpush.msra.mxu0 0.0
        %525 = vmatpush.msra.mxu0 0.0
        %526 = vmatpush.msra.mxu0 0.0
        %527 = vmatpush.msra.mxu0 0.0
        %528 = vmatpush.msra.mxu0 0.0
        %529 = vmatpush.msra.mxu0 0.0
        %530 = vmatpush.msra.mxu0 0.0
        %531 = vmatpush.msra.mxu0 0.0
        %532 = vmatpush.msra.mxu0 0.0
        %533 = vmatpush.msra.mxu0 0.0
        %534 = vmatpush.msra.mxu0 0.0
        %535 = vmatpush.msra.mxu0 0.0
        %536 = vmatpush.msra.mxu0 0.0
        %537 = vmatpush.msra.mxu0 0.0
        %538 = vmatpush.msra.mxu0 %v491
        %539 = vmatmul.f32.gmra.mxu0 %v521
        %v540 = vpop.f32.mrf.mxu0
        %v541 = vadd.f32 %v518, %v540
        %542 = vdwg.mxu0
        %vm543 = vcmask 261120
        %544 = vst.msk [vmem:[%s340] sm:$0xff] %vm543, %v541
        %s545 = sand.u32 %s226, 1
        %s546 = scalar_lea.sflag [#allocation5], %s545
        %s547 = sand.u32 %s226, 1
        %s548 = smul.addr %s547, 8
        %s549 = scalar_lea.vmem [#allocation6], %s548
        // Predicated region
        $region61: #{tpu_custom_call.1} parent=55 // pred_check
          %p550 = pneg %p236
        $region62: #{tpu_custom_call.1} parent=55 // pred_check_branch
          %552 = sbr.rel (%p550) target = $region64
        $region63: #{tpu_custom_call.1} parent=55 // pred_region
          %554 = vsyncadd %s546, 0
          %s555 = smul.addr %s24, 8
          %s556 = scalar_lea.hbm %s9, %s555
          %s558 = sshll.u32 %s549, 4
          %s559 = int_to_ptr.vmem [resolvable:$true] %s558
          %s560 = sshll.u32 %s556, 4
          %s561 = int_to_ptr.hbm [resolvable:$true] %s560
          %563 = dma.vmem_to_hbm [thread:$0]  %s559, 128, %s561, %s546
        $region64: #{tpu_custom_call.1} parent=55 // pred_fallthru
          _
      $region56: #{tpu_custom_call.1} parent=5 // pred_fallthru
        _
      %p564 = scmp.le.s32.totalorder 2, %s19
      // Predicated region
      $region65: #{tpu_custom_call.1} parent=5 // pred_check
        %p565 = pneg %p564
      $region66: #{tpu_custom_call.1} parent=5 // pred_check_branch
        %567 = sbr.rel (%p565) target = $region68
      $region67: #{tpu_custom_call.1} parent=5 // pred_region
        %s568 = ssub.s32 %s19, 2
        // Predicated region
        $region69: #{tpu_custom_call.1} parent=67 // pred_check
          %p569 = pneg %p242
        $region70: #{tpu_custom_call.1} parent=67 // pred_check_branch
          %571 = sbr.rel (%p569) target = $region72
        $region71: #{tpu_custom_call.1} parent=67 // pred_region
          %s572 = sand.u32 %s227, 1
          %s573 = scalar_lea.sflag [#allocation5], %s572
          %s574 = sand.u32 %s227, 1
          %s575 = smul.addr %s574, 8
          %s576 = scalar_lea.vmem [#allocation6], %s575
          %578 = dma.done %s573, 128
        $region72: #{tpu_custom_call.1} parent=67 // pred_fallthru
          _
      $region68: #{tpu_custom_call.1} parent=5 // pred_fallthru
        _
    $region6: #{tpu_custom_call.1} parent=1 // loop_footer
      %s23 = sadd.s32 1, %s19
    $region7: #{tpu_custom_call.1} parent=1 // loop_footer_branch
      %18 = sbr.rel target = $region3
    $region8: #{tpu_custom_call.1} parent=1 // loop_exit
      _
    %579 = vsyncpa [#allocation4], 1
    %s580 = scalar_lea.sflag [#allocation4], 1
    %581 = vsyncpa %s580, 1
    %582 = vsyncpa [#allocation5], 1
    %s583 = scalar_lea.sflag [#allocation5], 1
    %584 = vsyncpa %s583, 1

</llo_original>
